<compile_context>
chip_gen: v7x
topology: tpu7x:2x2x1
jax: 0.10.0
libtpu: 0.0.40
codegen_flags: <defaults>
</compile_context>

<pallas_src>
import functools

import jax
import jax.numpy as jnp
from jax.experimental import pallas as pl
from jax.experimental.pallas import tpu as pltpu


def _vmem_capacity_bytes():
    """Physical VMEM of the current chip; conservative fallback if unknown."""
    try:
        return int(pltpu.get_tpu_info().vmem_capacity_bytes)
    except Exception:
        return 64 * 1024 * 1024  # v7x per-TC VMEM (smallest of the generations)


def _choose_rows_per_block(num_rows, hw, itemsize, max_block_bytes):
    """Largest multiple-of-8 row count whose (rows, hw) block fits the budget.

    No exact-divisor requirement: the caller uses a cdiv grid and the kernel
    masks the ragged tail. If the data spans only 2-3 blocks, shrink blocks so
    the grid has >= 4 steps (lets a v7x megacore shard the parallel axis).
    """
    bytes_per_row = max(1, hw * itemsize)
    cap = max((max_block_bytes // bytes_per_row) // 8 * 8, 8)
    if num_rows <= cap:
        # Whole array fits in one block; full-extent block shape is always legal.
        return num_rows
    rows = cap
    num_blocks = -(-num_rows // rows)
    if num_blocks < 4:
        want = min(4, -(-num_rows // 8))
        rows = min(cap, max(8, (-(-num_rows // want)) // 8 * 8))
    return rows


def _tail_mask(rows_in_block, total_rows, rows_per_block):
    """(rows, 1) bool mask: True for rows that exist in the original array."""
    i = pl.program_id(0)
    valid = total_rows - i * rows_per_block
    row_ids = jax.lax.broadcasted_iota(jnp.int32, (rows_in_block, 1), 0)
    return row_ids < valid


def _sq_sum_kernel(pred_ref, gt_ref, out_ref, *, total_rows, rows_per_block,
                   ragged):
    """Unweighted: raw sum of squared differences for this row block."""
    p = pred_ref[...].astype(jnp.float32)
    g = gt_ref[...].astype(jnp.float32)
    d = p - g
    if ragged:
        d = jnp.where(_tail_mask(d.shape[0], total_rows, rows_per_block), d, 0.0)
    s = jnp.sum(d * d)
    out_ref[...] = jnp.full(out_ref.shape, s, dtype=jnp.float32)


def _sq_sum_weighted_kernel(pred_ref, gt_ref, w_ref, out_ref, *, total_rows,
                            rows_per_block, ragged):
    """Weighted: w_ref is this block's (rows, 1) slice of the weight array."""
    p = pred_ref[...].astype(jnp.float32)
    g = gt_ref[...].astype(jnp.float32)
    w = w_ref[...].astype(jnp.float32)          # (rows, 1)
    d = (p - g) * w                             # broadcast along lanes
    if ragged:
        d = jnp.where(_tail_mask(d.shape[0], total_rows, rows_per_block), d, 0.0)
    s = jnp.sum(d * d)
    out_ref[...] = jnp.full(out_ref.shape, s, dtype=jnp.float32)


def joints_mse_loss(output, target, target_weight=None, use_target_weight=False,
                    max_block_bytes=8 * 1024 * 1024):
    """output, target: (B, J, H, W). target_weight: (B, J, 1) or (B, J)."""
    B, J, H, W = output.shape
    HW = H * W
    R = B * J

    # Free reshapes only — no transpose, no dtype cast in HBM.
    pred = output.reshape(R, HW)
    gt = target.reshape(R, HW)
    itemsize = jnp.dtype(output.dtype).itemsize

    # Generation-aware sizing: keep 2 inputs x 2 buffers (+ padded weight
    # buffers + headroom) inside ~3/4 of this chip's physical VMEM.
    vmem_cap = _vmem_capacity_bytes()
    headroom = 4 * 1024 * 1024
    hard_cap = max(((3 * vmem_cap) // 4 - headroom) // 5, 512 * 1024)
    block_budget = min(max_block_bytes, hard_cap)

    rows_per_block = _choose_rows_per_block(R, HW, itemsize, block_budget)
    num_blocks = -(-R // rows_per_block)
    ragged = (R % rows_per_block) != 0

    # Computed VMEM limit: inputs (double-buffered) + lane-padded weight
    # buffers + output tiles + headroom.  Never below what we actually need.
    block_bytes = rows_per_block * HW * itemsize
    weight_bytes = 2 * rows_per_block * 128 * 4 if use_target_weight else 0
    needed = 4 * block_bytes + weight_bytes + 2 * 8 * 128 * 4 + headroom
    vmem_limit = int(max(needed, 16 * 1024 * 1024))

    pred_spec = pl.BlockSpec((rows_per_block, HW), lambda i: (i, 0))
    gt_spec = pl.BlockSpec((rows_per_block, HW), lambda i: (i, 0))
    # Per-block partial sums, each broadcast into a lane-dense (8, 128) tile.
    out_shape = jax.ShapeDtypeStruct((num_blocks, 8, 128), jnp.float32)
    out_spec = pl.BlockSpec((1, 8, 128), lambda i: (i, 0, 0))

    compiler_params = pltpu.CompilerParams(
        # Independent per-block partials: safe to shard across TCs (v7x).
        dimension_semantics=("parallel",),
        vmem_limit_bytes=vmem_limit,
    )
    cost = pl.CostEstimate(
        flops=(4 if use_target_weight else 3) * R * HW,
        transcendentals=0,
        bytes_accessed=2 * R * HW * itemsize
        + (R * 4 if use_target_weight else 0)
        + num_blocks * 8 * 128 * 4,
    )

    if use_target_weight:
        w = target_weight.reshape(R, 1)
        kernel = functools.partial(
            _sq_sum_weighted_kernel,
            total_rows=R, rows_per_block=rows_per_block, ragged=ragged)
        partials = pl.pallas_call(
            kernel,
            out_shape=out_shape,
            grid_spec=pltpu.PrefetchScalarGridSpec(
                num_scalar_prefetch=0,
                grid=(num_blocks,),
                in_specs=[
                    pred_spec,
                    gt_spec,
                    # Per-block weight slice: tiny DMA, no full lane-padded
                    # (R, 1) array resident (and double-buffered) in VMEM.
                    pl.BlockSpec((rows_per_block, 1), lambda i: (i, 0)),
                ],
                out_specs=out_spec,
            ),
            compiler_params=compiler_params,
            cost_estimate=cost,
        )(pred, gt, w)
    else:
        kernel = functools.partial(
            _sq_sum_kernel,
            total_rows=R, rows_per_block=rows_per_block, ragged=ragged)
        partials = pl.pallas_call(
            kernel,
            out_shape=out_shape,
            grid_spec=pltpu.PrefetchScalarGridSpec(
                num_scalar_prefetch=0,
                grid=(num_blocks,),
                in_specs=[pred_spec, gt_spec],
                out_specs=out_spec,
            ),
            compiler_params=compiler_params,
            cost_estimate=cost,
        )(pred, gt)

    # Single scaling 0.5 / (J * B * HW) and tiny cross-block reduce in JAX.
    scale = jnp.float32(0.5 / float(J * B * HW))
    return jnp.sum(partials[:, 0, 0]) * scale


def _reference_loss(output, target, target_weight=None, use_target_weight=False):
    """Pure-JAX mirror of the PyTorch forward for validation."""
    B, J, H, W = output.shape
    pred = output.reshape(B, J, -1).astype(jnp.float32)
    gt = target.reshape(B, J, -1).astype(jnp.float32)
    loss = 0.0
    for idx in range(J):
        p = pred[:, idx, :]
        g = gt[:, idx, :]
        if use_target_weight:
            wj = target_weight.reshape(B, J, 1)[:, idx].astype(jnp.float32)  # (B, 1)
            p = p * wj
            g = g * wj
        loss = loss + 0.5 * jnp.mean((p - g) ** 2)
    return loss / J


if __name__ == "__main__":
    key = jax.random.PRNGKey(0)
    ks = jax.random.split(key, 9)

    # --- Case 1: small f32, single block, unweighted and weighted. ---
    B, J, H, W = 2, 4, 16, 16
    output = jax.random.normal(ks[0], (B, J, H, W), dtype=jnp.float32)
    target = jax.random.normal(ks[1], (B, J, H, W), dtype=jnp.float32)
    target_weight = jax.random.uniform(ks[2], (B, J, 1), dtype=jnp.float32)

    loss = jax.block_until_ready(joints_mse_loss(output, target))
    ref = _reference_loss(output, target)
    assert jnp.allclose(loss, ref, rtol=1e-5, atol=1e-6), (loss, ref)

    loss = jax.block_until_ready(
        joints_mse_loss(output, target, target_weight, use_target_weight=True))
    ref = _reference_loss(output, target, target_weight, use_target_weight=True)
    assert jnp.allclose(loss, ref, rtol=1e-5, atol=1e-6), (loss, ref)

    # --- Case 2: divisible multi-block grid (small budget forces 4 blocks). ---
    B2, J2 = 4, 8
    out2 = jax.random.normal(ks[3], (B2, J2, H, W), dtype=jnp.float32)
    tgt2 = jax.random.normal(ks[4], (B2, J2, H, W), dtype=jnp.float32)
    tw2 = jax.random.uniform(ks[5], (B2, J2, 1), dtype=jnp.float32)

    l2 = jax.block_until_ready(joints_mse_loss(out2, tgt2, max_block_bytes=8 * 1024))
    r2 = _reference_loss(out2, tgt2)
    assert jnp.allclose(l2, r2, rtol=1e-5, atol=1e-6), (l2, r2)

    l2w = jax.block_until_ready(
        joints_mse_loss(out2, tgt2, tw2, use_target_weight=True,
                        max_block_bytes=8 * 1024))
    r2w = _reference_loss(out2, tgt2, tw2, use_target_weight=True)
    assert jnp.allclose(l2w, r2w, rtol=1e-5, atol=1e-6), (l2w, r2w)

    # --- Case 3: ragged grid (B*J = 21, 8-row blocks -> cdiv grid of 3 with a
    #     masked 5-row tail), unweighted and weighted. ---
    B3, J3 = 3, 7
    out3 = jax.random.normal(ks[6], (B3, J3, H, W), dtype=jnp.float32)
    tgt3 = jax.random.normal(ks[7], (B3, J3, H, W), dtype=jnp.float32)
    tw3 = jax.random.uniform(ks[8], (B3, J3, 1), dtype=jnp.float32)

    l3 = jax.block_until_ready(joints_mse_loss(out3, tgt3, max_block_bytes=8 * 1024))
    r3 = _reference_loss(out3, tgt3)
    assert jnp.allclose(l3, r3, rtol=1e-5, atol=1e-6), (l3, r3)

    l3w = jax.block_until_ready(
        joints_mse_loss(out3, tgt3, tw3, use_target_weight=True,
                        max_block_bytes=8 * 1024))
    r3w = _reference_loss(out3, tgt3, tw3, use_target_weight=True)
    assert jnp.allclose(l3w, r3w, rtol=1e-5, atol=1e-6), (l3w, r3w)

    # --- Case 4: bf16 heatmaps stay bf16 across the boundary (upcast in-kernel). ---
    out_bf = output.astype(jnp.bfloat16)
    tgt_bf = target.astype(jnp.bfloat16)
    tw_bf = target_weight.astype(jnp.bfloat16)
    loss_bf = jax.block_until_ready(
        joints_mse_loss(out_bf, tgt_bf, tw_bf, use_target_weight=True))
    ref_bf = _reference_loss(out_bf, tgt_bf, tw_bf, use_target_weight=True)
    assert jnp.allclose(loss_bf, ref_bf, rtol=1e-4, atol=1e-6), (loss_bf, ref_bf)

    print("KERNEL_OK")
</pallas_src>

<mosaic_0001>
module attributes {stable_mosaic.version = 11 : i64} {
  func.func @_sq_sum_kernel(%arg0: i32, %arg1: memref<8x256xf32, #tpu.memory_space<vmem>>, %arg2: memref<8x256xf32, #tpu.memory_space<vmem>>, %arg3: memref<1x8x128xf32, #tpu.memory_space<vmem>>) attributes {dimension_semantics = [#tpu.dimension_semantics<parallel>], iteration_bounds = array<i64: 1>, scalar_prefetch = 0 : i64, scratch_operands = 0 : i64, tpu.core_type = #tpu.core_type<tc>, window_params = [{transform_indices = @transform_0, window_bounds = array<i64: 8, 256>}, {transform_indices = @transform_1, window_bounds = array<i64: 8, 256>}, {transform_indices = @transform_2, window_bounds = array<i64: 1, 8, 128>}]} {
    %c0 = arith.constant 0 : index
    %c0_0 = arith.constant 0 : index
    %0 = vector.load %arg1[%c0, %c0_0] : memref<8x256xf32, #tpu.memory_space<vmem>>, vector<8x256xf32>
    %c0_1 = arith.constant 0 : index
    %c0_2 = arith.constant 0 : index
    %1 = vector.load %arg2[%c0_1, %c0_2] : memref<8x256xf32, #tpu.memory_space<vmem>>, vector<8x256xf32>
    %2 = arith.subf %0, %1 : vector<8x256xf32>
    %3 = arith.mulf %2, %2 : vector<8x256xf32>
    %4 = vector.shape_cast %3 : vector<8x256xf32> to vector<1x8x256xf32>
    %cst = arith.constant dense<0.000000e+00> : vector<1xf32>
    %5 = vector.multi_reduction <add>, %4, %cst [1, 2] : vector<1x8x256xf32> to vector<1xf32>
    %6 = vector.shape_cast %5 : vector<1xf32> to vector<1x1x1xf32>
    %7 = vector.extract %6[0, 0, 0] : f32 from vector<1x1x1xf32>
    %8 = vector.broadcast %7 : f32 to vector<1x8x128xf32>
    %c0_3 = arith.constant 0 : index
    %c0_4 = arith.constant 0 : index
    %c0_5 = arith.constant 0 : index
    %9 = vector.load %arg3[%c0_3, %c0_4, %c0_5] : memref<1x8x128xf32, #tpu.memory_space<vmem>>, vector<1x8x128xf32>
    tpu.vector_store %arg3[%c0_3, %c0_4, %c0_5], %8 {strides = array<i32>} : memref<1x8x128xf32, #tpu.memory_space<vmem>>, vector<1x8x128xf32>,
    return
  }
  func.func @transform_0(%arg0: i32) -> (i32, i32) {
    %c0_i32 = arith.constant 0 : i32
    %c0_i32_0 = arith.constant 0 : i32
    return %arg0, %c0_i32 : i32, i32
  }
  func.func @transform_1(%arg0: i32) -> (i32, i32) {
    %c0_i32 = arith.constant 0 : i32
    %c0_i32_0 = arith.constant 0 : i32
    return %arg0, %c0_i32 : i32, i32
  }
  func.func @transform_2(%arg0: i32) -> (i32, i32, i32) {
    %c0_i32 = arith.constant 0 : i32
    %c0_i32_0 = arith.constant 0 : i32
    %c0_i32_1 = arith.constant 0 : i32
    return %arg0, %c0_i32, %c0_i32_0 : i32, i32, i32
  }
}

</mosaic_0001>

<llo_original>
// kernel: tpu_custom_call.1
$region0: #{tpu_custom_call.1}
  #allocation0 [shape = 'u32[]', space=smem, size = 0x4, offset = 0x4, fixed_abs, tag = 'smem constant byte address 0x4 - core index']
  #allocation1 [shape = 'u32[144,128]{1,0:T(1,128)}', space=vmem, size = 0x12000, scoped, tag = 'internal scratch']
  %s0 = inlined_call_operand.hbm [shape: f32[8,256], index: 0, kind: input, shape index: {}]
  %s1 = inlined_call_operand.hbm [shape: f32[8,256], index: 1, kind: input, shape index: {}]
  %s2 = inlined_call_operand.hbm [shape: f32[1,8,128], index: 2, kind: output, shape index: {}]
  %s3 = sld [smem:[#allocation0]]
  $region26: #{tpu_custom_call.1} parent=0
    _
  %s5 = ssub.s32 1, %s3
  %s6 = scalar_select 0, %s5, %s3
  $region1: #{tpu_custom_call.1} parent=0
    #allocation2 [shape = 'u8[8192]{0}', space=vmem, size = 0x2000, scoped, tag = 'input window, operand 0, single buffered']
    #allocation3 [shape = 's32[1]{0}', space=sflag, size = 0x4, scoped, tag = 'scoped memory for tpu_custom_call.1']
    #allocation4 [shape = 's32[1]{0}', space=sflag, size = 0x4, scoped, tag = 'scoped memory for tpu_custom_call.1']
    #allocation5 [shape = 'u8[8192]{0}', space=vmem, size = 0x2000, scoped, tag = 'input window, operand 1, single buffered']
    #allocation6 [shape = 's32[1]{0}', space=sflag, size = 0x4, scoped, tag = 'scoped memory for tpu_custom_call.1']
    #allocation7 [shape = 'u8[4096]{0}', space=vmem, size = 0x1000, scoped, tag = 'output window, operand 0, single buffered']
    %7 = vsyncpa [#allocation3], 0
    %8 = vsyncpa [#allocation6], 0
    %9 = vsyncpa [#allocation4], 0
    // Predicated region
    $region2: #{tpu_custom_call.1} parent=1 // pred_check
      _
    $region3: #{tpu_custom_call.1} parent=1 // pred_check_branch
      %11 = sbr.rel (0) target = $region5
    $region4: #{tpu_custom_call.1} parent=1 // pred_region
      %s13 = ssub.s32 256, 256
      %14 = vsyncadd [#allocation3], %s13
      %s16 = sshll.u32 [#allocation2], 4
      %s17 = int_to_ptr.vmem [resolvable:$true] %s16
      %19 = dma.hbm_to_vmem [thread:$0]  %s0, 256, %s17, [#allocation3]
    $region5: #{tpu_custom_call.1} parent=1 // pred_fallthru
      _
    // Predicated region
    $region6: #{tpu_custom_call.1} parent=1 // pred_check
      _
    $region7: #{tpu_custom_call.1} parent=1 // pred_check_branch
      %21 = sbr.rel (0) target = $region9
    $region8: #{tpu_custom_call.1} parent=1 // pred_region
      %s23 = ssub.s32 256, 256
      %24 = vsyncadd [#allocation6], %s23
      %s26 = sshll.u32 [#allocation5], 4
      %s27 = int_to_ptr.vmem [resolvable:$true] %s26
      %29 = dma.hbm_to_vmem [thread:$0]  %s1, 256, %s27, [#allocation6]
    $region9: #{tpu_custom_call.1} parent=1 // pred_fallthru
      _
    // Predicated region
    $region10: #{tpu_custom_call.1} parent=1 // pred_check
      _
    $region11: #{tpu_custom_call.1} parent=1 // pred_check_branch
      %31 = sbr.rel (0) target = $region13
    $region12: #{tpu_custom_call.1} parent=1 // pred_region
      %32 = dma.done [#allocation3], 256
    $region13: #{tpu_custom_call.1} parent=1 // pred_fallthru
      _
    // Predicated region
    $region14: #{tpu_custom_call.1} parent=1 // pred_check
      _
    $region15: #{tpu_custom_call.1} parent=1 // pred_check_branch
      %34 = sbr.rel (0) target = $region17
    $region16: #{tpu_custom_call.1} parent=1 // pred_region
      %35 = dma.done [#allocation6], 256
    $region17: #{tpu_custom_call.1} parent=1 // pred_fallthru
      _
    %v36 = vld [vmem:[#allocation2] sm:$0xff]
    %v37 = vld [vmem:[#allocation2 + $0x8] sm:$0xff]
    %v38 = vld [vmem:[#allocation5] sm:$0xff]
    %v39 = vld [vmem:[#allocation5 + $0x8] sm:$0xff]
    %v40 = vsub.f32 %v36, %v38
    %v41 = vsub.f32 %v37, %v39
    %v42 = vmul.f32 %v40, %v40
    %v43 = vmul.f32 %v41, %v41
    %v44 = vadd.f32 %v42, %v43
    %45 = vadd.xlane.f32.xlu0 %v44
    %v46 = vpop.xlane.xlu0 %45
    %v47 = vrot.slane %v46, 4
    %v48 = vadd.f32 %v46, %v47
    %v49 = vrot.slane %v48, 2
    %v50 = vadd.f32 %v48, %v49
    %v51 = vrot.slane %v50, 1
    %v52 = vadd.f32 %v50, %v51
    %s53 = vtos %v52
    %v54 = vstv %s53
    %55 = vst [vmem:[#allocation7] sm:$0xff] %v54
    // Predicated region
    $region18: #{tpu_custom_call.1} parent=1 // pred_check
      _
    $region19: #{tpu_custom_call.1} parent=1 // pred_check_branch
      %57 = sbr.rel (0) target = $region21
    $region20: #{tpu_custom_call.1} parent=1 // pred_region
      %s59 = ssub.s32 128, 128
      %60 = vsyncadd [#allocation4], %s59
      %s62 = sshll.u32 [#allocation7], 4
      %s63 = int_to_ptr.vmem [resolvable:$true] %s62
      %65 = dma.vmem_to_hbm [thread:$0]  %s63, 128, %s2, [#allocation4]
    $region21: #{tpu_custom_call.1} parent=1 // pred_fallthru
      _
    // Predicated region
    $region22: #{tpu_custom_call.1} parent=1 // pred_check
      _
    $region23: #{tpu_custom_call.1} parent=1 // pred_check_branch
      %67 = sbr.rel (0) target = $region25
    $region24: #{tpu_custom_call.1} parent=1 // pred_region
      %68 = dma.done [#allocation4], 128
    $region25: #{tpu_custom_call.1} parent=1 // pred_fallthru
      _
    %69 = vsyncpa [#allocation3], 1
    %70 = vsyncpa [#allocation6], 1
    %71 = vsyncpa [#allocation4], 1

</llo_original>
